<compile_context>
chip_gen: v6e
topology: v6e:2x2x1
jax: 0.10.0
libtpu: 0.0.40
codegen_flags: <defaults>
</compile_context>

<pallas_src>
import jax
import jax.numpy as jnp
from jax.experimental import pallas as pl
from jax.experimental.pallas import tpu as pltpu


def attention_kernel(x_ref, w_ref, b_ref, o_ref):
    # x_ref: (TB, S, H) block of batch rows, in the input's native dtype
    # w_ref: (1, H)     linear weight (nn.Linear(H, 1).weight), f32
    # b_ref: (1,)       linear bias in SMEM, f32
    # o_ref: (TB, H)    context vectors for this batch tile (input dtype)
    xf = x_ref[...].astype(jnp.float32)            # upcast on the VPU (hidden under DMA)
    w = w_ref[...]                                  # (1, H) -> broadcasts over (TB, S, H)
    b = b_ref[0]                                    # scalar bias from SMEM

    # attention scores, lane-dense: (TB, S) with S on the lane axis.
    scores = jnp.sum(xf * w, axis=-1) + b           # (TB, S)

    # numerically-stable softmax over the sequence axis (PyTorch dim=1),
    # all stats are cheap lane reductions on dense vregs.
    m = jnp.max(scores, axis=-1, keepdims=True)     # (TB, 1)
    e = jnp.exp(scores - m)                          # (TB, S)
    den = jnp.sum(e, axis=-1, keepdims=True)         # (TB, 1)

    # EUP approximate reciprocal + one Newton step (~f32 accuracy, off the VALU).
    inv = pl.reciprocal(den, approx=True)
    inv = inv * (2.0 - den * inv)
    wgt = e * inv                                     # normalized weights (TB, S)

    # context = sum_s wgt[b,s] * x[b,s,:]  -> (TB, H)  (per-row, VPU + sublane reduce)
    ctx = jnp.sum(wgt[:, :, None] * xf, axis=1)
    o_ref[...] = ctx.astype(o_ref.dtype)


def attention_forward(x, weight, bias, *, target_block_bytes=None):
    """x: (B, S, H) in any float dtype; weight: (1, H) or (H,); bias: (1,).

    Returns the context vector (B, H) in x's dtype.
    """
    B, S, H = x.shape
    out_dtype = x.dtype
    itemsize = x.dtype.itemsize
    w2 = jnp.asarray(weight).reshape(1, H).astype(jnp.float32)   # tiny, f32 is fine
    b1 = jnp.asarray(bias).reshape(1).astype(jnp.float32)

    # Generation-aware x-block target (bytes of the x block in its native dtype).
    kind = ""
    try:
        kind = jax.devices()[0].device_kind.lower()
    except Exception:
        kind = ""
    if target_block_bytes is None:
        # v7x streams ~2.3x faster per byte, so it needs bigger blocks to keep
        # the ~0.35us/step overhead amortized; v5e/v6e are happy with ~2 MiB.
        target_block_bytes = (4 << 20) if "v7" in kind else (2 << 20)

    # Batch tile.  Effective VMEM per step ~= 2x block (double buffer) +
    # ~3x f32-block (in-kernel f32 copy + elementwise temps), so a 2-4 MiB
    # block target stays well under the 32 MiB scoped limit set below.
    per_batch_bytes = S * H * itemsize
    tb = max(1, min(B, target_block_bytes // max(per_batch_bytes, 1)))
    if tb < B:
        # Keep the (TB, H) output block sublane-aligned (TB multiple of 8);
        # otherwise TB == B and the block equals the full array dim.
        tb = min(B, max(8, (tb // 8) * 8))
    # v7x has 2 TensorCores: when the whole batch fits one block but B is big
    # enough, split into >= 2 parallel grid steps so both cores get work.
    if "v7" in kind and tb == B and B >= 16:
        tb = min(B, ((pl.cdiv(B, 2) + 7) // 8) * 8)

    grid = (pl.cdiv(B, tb),)
    # If B % tb != 0 the last block is padded by Pallas; padded rows are
    # computed independently (per-row softmax) and their writes are masked,
    # so valid rows remain correct.

    cost = pl.CostEstimate(
        flops=4 * B * S * H,
        transcendentals=B * S,
        bytes_accessed=B * S * H * itemsize + B * H * itemsize + (H + 1) * 4,
    )

    return pl.pallas_call(
        attention_kernel,
        out_shape=jax.ShapeDtypeStruct((B, H), out_dtype),
        grid_spec=pltpu.PrefetchScalarGridSpec(
            num_scalar_prefetch=0,
            grid=grid,
            in_specs=[
                pl.BlockSpec((tb, S, H), lambda i: (i, 0, 0)),
                pl.BlockSpec((1, H), lambda i: (0, 0)),
                pl.BlockSpec(memory_space=pltpu.MemorySpace.SMEM),
            ],
            out_specs=pl.BlockSpec((tb, H), lambda i: (i, 0)),
        ),
        compiler_params=pltpu.CompilerParams(
            dimension_semantics=("parallel",),
            vmem_limit_bytes=32 * 1024 * 1024,   # >= scoped default on every gen
        ),
        cost_estimate=cost,
    )(x, w2, b1)


def attention_reference(x, weight, bias):
    xf = x.astype(jnp.float32)
    scores = jnp.einsum("bsh,oh->bso", xf, weight.astype(jnp.float32)) + bias
    w = jax.nn.softmax(scores, axis=1)
    return jnp.sum(w * xf, axis=1).astype(x.dtype)


if __name__ == "__main__":
    key = jax.random.PRNGKey(0)
    B, S, H = 2, 8, 32

    kx, kw, kb = jax.random.split(key, 3)
    x = jax.random.normal(kx, (B, S, H), dtype=jnp.float32)
    # Deterministic init mimicking nn.Linear(H, 1): weight (1, H), bias (1,)
    bound = 1.0 / (H ** 0.5)
    weight = jax.random.uniform(kw, (1, H), jnp.float32, -bound, bound)
    bias = jax.random.uniform(kb, (1,), jnp.float32, -bound, bound)

    # 1) Small f32 case (matches the module's default usage).
    out = jax.block_until_ready(attention_forward(x, weight, bias))
    ref = attention_reference(x, weight, bias)
    assert out.shape == (B, H)
    assert jnp.allclose(out, ref, atol=1e-5, rtol=1e-5), "f32 mismatch vs reference"

    # 2) Native-bf16 input path (no wrapper pre-cast; upcast happens in-kernel).
    x_bf16 = x.astype(jnp.bfloat16)
    out_bf16 = jax.block_until_ready(attention_forward(x_bf16, weight, bias))
    ref_bf16 = attention_reference(x_bf16, weight, bias)
    assert out_bf16.dtype == jnp.bfloat16
    assert jnp.allclose(out_bf16.astype(jnp.float32), ref_bf16.astype(jnp.float32),
                        atol=2e-2, rtol=2e-2), "bf16 mismatch vs reference"

    # 3) Batch-tiled path with a padded final block (B % tb != 0).
    B2 = 20
    x2 = jax.random.normal(jax.random.PRNGKey(1), (B2, S, H), dtype=jnp.float32)
    out2 = jax.block_until_ready(
        attention_forward(x2, weight, bias, target_block_bytes=8 * S * H * 4))
    ref2 = attention_reference(x2, weight, bias)
    assert jnp.allclose(out2, ref2, atol=1e-5, rtol=1e-5), "tiled mismatch vs reference"

    print("KERNEL_OK")
</pallas_src>

<mosaic_0001>
module attributes {stable_mosaic.version = 11 : i64} {
  func.func @attention_kernel(%arg0: i32, %arg1: memref<2x8x32xf32, #tpu.memory_space<vmem>>, %arg2: memref<1x32xf32, #tpu.memory_space<vmem>>, %arg3: memref<1xf32, #tpu.memory_space<smem>>, %arg4: memref<2x32xf32, #tpu.memory_space<vmem>>) attributes {dimension_semantics = [#tpu.dimension_semantics<parallel>], iteration_bounds = array<i64: 1>, scalar_prefetch = 0 : i64, scratch_operands = 0 : i64, tpu.core_type = #tpu.core_type<tc>, window_params = [{transform_indices = @transform_0, window_bounds = array<i64: 2, 8, 32>}, {pipeline_mode = #tpu.pipeline_mode<synchronous>, transform_indices = @transform_1, window_bounds = array<i64: 1, 32>}, {transform_indices = @transform_2, window_bounds = array<i64: 1>}, {transform_indices = @transform_3, window_bounds = array<i64: 2, 32>}]} {
    %c0 = arith.constant 0 : index
    %c0_0 = arith.constant 0 : index
    %c0_1 = arith.constant 0 : index
    %0 = vector.load %arg1[%c0, %c0_0, %c0_1] : memref<2x8x32xf32, #tpu.memory_space<vmem>>, vector<2x8x32xf32>
    %c0_2 = arith.constant 0 : index
    %c0_3 = arith.constant 0 : index
    %1 = vector.load %arg2[%c0_2, %c0_3] : memref<1x32xf32, #tpu.memory_space<vmem>>, vector<1x32xf32>
    %c0_4 = arith.constant 0 : index
    %2 = memref.load %arg3[%c0_4] : memref<1xf32, #tpu.memory_space<smem>>
    %3 = vector.shape_cast %1 : vector<1x32xf32> to vector<1x1x32xf32>
    %4 = vector.broadcast %3 : vector<1x1x32xf32> to vector<2x8x32xf32>
    %5 = arith.mulf %0, %4 : vector<2x8x32xf32>
    %cst = arith.constant dense<0.000000e+00> : vector<2x8xf32>
    %6 = vector.multi_reduction <add>, %5, %cst [2] : vector<2x8x32xf32> to vector<2x8xf32>
    %7 = vector.broadcast %2 : f32 to vector<2x8xf32>
    %8 = arith.addf %6, %7 : vector<2x8xf32>
    %cst_5 = arith.constant dense<0xFF800000> : vector<2xf32>
    %9 = vector.multi_reduction <maximumf>, %8, %cst_5 [1] : vector<2x8xf32> to vector<2xf32>
    %10 = vector.shape_cast %9 : vector<2xf32> to vector<2x1xf32>
    %11 = vector.broadcast %10 : vector<2x1xf32> to vector<2x8xf32>
    %12 = arith.subf %8, %11 : vector<2x8xf32>
    %13 = math.exp %12 : vector<2x8xf32>
    %cst_6 = arith.constant dense<0.000000e+00> : vector<2xf32>
    %14 = vector.multi_reduction <add>, %13, %cst_6 [1] : vector<2x8xf32> to vector<2xf32>
    %15 = vector.shape_cast %14 : vector<2xf32> to vector<2x1xf32>
    %16 = tpu.reciprocal %15 {approx = true} : vector<2x1xf32> -> vector<2x1xf32>
    %17 = arith.mulf %15, %16 : vector<2x1xf32>
    %cst_7 = arith.constant 2.000000e+00 : f32
    %18 = vector.broadcast %cst_7 : f32 to vector<2x1xf32>
    %19 = arith.subf %18, %17 : vector<2x1xf32>
    %20 = arith.mulf %16, %19 : vector<2x1xf32>
    %21 = vector.broadcast %20 : vector<2x1xf32> to vector<2x8xf32>
    %22 = arith.mulf %13, %21 : vector<2x8xf32>
    %23 = vector.shape_cast %22 : vector<2x8xf32> to vector<2x8x1xf32>
    %24 = vector.broadcast %23 : vector<2x8x1xf32> to vector<2x8x32xf32>
    %25 = arith.mulf %24, %0 : vector<2x8x32xf32>
    %cst_8 = arith.constant dense<0.000000e+00> : vector<2x32xf32>
    %26 = vector.multi_reduction <add>, %25, %cst_8 [1] : vector<2x8x32xf32> to vector<2x32xf32>
    %c0_9 = arith.constant 0 : index
    %c0_10 = arith.constant 0 : index
    %27 = vector.load %arg4[%c0_9, %c0_10] : memref<2x32xf32, #tpu.memory_space<vmem>>, vector<2x32xf32>
    tpu.vector_store %arg4[%c0_9, %c0_10], %26 {strides = array<i32>} : memref<2x32xf32, #tpu.memory_space<vmem>>, vector<2x32xf32>,
    return
  }
  func.func @transform_0(%arg0: i32) -> (i32, i32, i32) {
    %c0_i32 = arith.constant 0 : i32
    %c0_i32_0 = arith.constant 0 : i32
    %c0_i32_1 = arith.constant 0 : i32
    return %arg0, %c0_i32, %c0_i32_0 : i32, i32, i32
  }
  func.func @transform_1(%arg0: i32) -> (i32, i32) {
    %c0_i32 = arith.constant 0 : i32
    %c0_i32_0 = arith.constant 0 : i32
    %c0_i32_1 = arith.constant 0 : i32
    return %c0_i32, %c0_i32_0 : i32, i32
  }
  func.func @transform_2(%arg0: i32) -> i32 {
    %c0_i32 = arith.constant 0 : i32
    %c0_i32_0 = arith.constant 0 : i32
    return %c0_i32 : i32
  }
  func.func @transform_3(%arg0: i32) -> (i32, i32) {
    %c0_i32 = arith.constant 0 : i32
    %c0_i32_0 = arith.constant 0 : i32
    return %arg0, %c0_i32 : i32, i32
  }
}

</mosaic_0001>

<llo_original>
// kernel: tpu_custom_call.1
$region0: #{tpu_custom_call.1}
  #allocation0 [shape = 'u32[]', space=smem, size = 0x4, offset = 0x4, fixed_abs, tag = 'smem constant byte address 0x4 - core index']
  #allocation1 [shape = 'u32[144,128]{1,0:T(1,128)}', space=vmem, size = 0x12000, scoped, tag = 'internal scratch']
  #allocation2 [shape = 'f32[1]{0:T(128)S(6)}', space=smem, size = 0x200, scoped, tag = 'scoped memory for tpu_custom_call.1']
  %s0 = inlined_call_operand.hbm [shape: f32[2,8,32], index: 0, kind: input, shape index: {}]
  %s1 = inlined_call_operand.vmem [shape: f32[1,32], index: 1, kind: input, shape index: {}]
  %s2 = inlined_call_operand.<no memory space> [shape: f32[1], index: 2, kind: input, shape index: {}]
  %s3 = inlined_call_operand.hbm [shape: f32[2,32], index: 3, kind: output, shape index: {}]
  %s4 = sld [smem:[#allocation0]]
  $region26: #{tpu_custom_call.1} parent=0
    _
  %s6 = ssub.s32 1, %s4
  %s7 = scalar_select 0, %s6, %s4
  %8 = sst [smem:[#allocation2]] %s2
  $region1: #{tpu_custom_call.1} parent=0
    #allocation3 [shape = 'u8[8192]{0}', space=vmem, size = 0x2000, scoped, tag = 'input window, operand 0, single buffered']
    #allocation4 [shape = 's32[1]{0}', space=sflag, size = 0x4, scoped, tag = 'scoped memory for tpu_custom_call.1']
    #allocation5 [shape = 's32[1]{0}', space=sflag, size = 0x4, scoped, tag = 'scoped memory for tpu_custom_call.1']
    #allocation6 [shape = 'u8[1024]{0}', space=vmem, size = 0x400, scoped, tag = 'output window, operand 0, single buffered']
    %9 = vsyncpa [#allocation4], 0
    %10 = vsyncpa [#allocation5], 0
    // Predicated region
    $region2: #{tpu_custom_call.1} parent=1 // pred_check
      _
    $region3: #{tpu_custom_call.1} parent=1 // pred_check_branch
      %12 = sbr.rel (0) target = $region5
    $region4: #{tpu_custom_call.1} parent=1 // pred_region
      %s14 = ssub.s32 256, 256
      %15 = vsyncadd [#allocation4], %s14
      %s16 = sshll.u32 [#allocation3], 4
      %s17 = int_to_ptr.vmem [resolvable:$true] %s16
      %22 = dma.hbm_to_vmem [thread:$0]  %s0, 256, %s17, [#allocation4], 128, 128, 8
    $region5: #{tpu_custom_call.1} parent=1 // pred_fallthru
      _
    // Predicated region
    $region6: #{tpu_custom_call.1} parent=1 // pred_check
      _
    $region7: #{tpu_custom_call.1} parent=1 // pred_check_branch
      %24 = sbr.rel (0) target = $region9
    $region8: #{tpu_custom_call.1} parent=1 // pred_region
      _
    $region9: #{tpu_custom_call.1} parent=1 // pred_fallthru
      _
    // Predicated region
    $region10: #{tpu_custom_call.1} parent=1 // pred_check
      _
    $region11: #{tpu_custom_call.1} parent=1 // pred_check_branch
      %26 = sbr.rel (0) target = $region13
    $region12: #{tpu_custom_call.1} parent=1 // pred_region
      _
    $region13: #{tpu_custom_call.1} parent=1 // pred_fallthru
      _
    // Predicated region
    $region14: #{tpu_custom_call.1} parent=1 // pred_check
      _
    $region15: #{tpu_custom_call.1} parent=1 // pred_check_branch
      %28 = sbr.rel (0) target = $region17
    $region16: #{tpu_custom_call.1} parent=1 // pred_region
      %29 = dma.done [#allocation4], 256
    $region17: #{tpu_custom_call.1} parent=1 // pred_fallthru
      _
    %v30 = vld [vmem:[#allocation3] sm:$0xff]
    %v31 = vld [vmem:[#allocation3 + $0x8] sm:$0xff]
    %v32 = vld [vmem:[%s1] sm:$0x1]
    %s33 = sld [smem:[#allocation2]]
    %v35 = vlaneseq
    %v36 = vshrl.u32 %v35, 7
    %v37 = vsub.s32 0, %v36
    %v38 = vrot.slane %v32, %v37
    %v40 = vmul.f32 %v30, %v38
    %v41 = vmul.f32 %v31, %v38
    %vm42 = vcmask 261120
    %v43 = vsel %vm42, %v40, 0.0
    %44 = vadd.xlane.f32.xlu0 %v43
    %v45 = vpop.xlane.xlu0 %44
    %v46 = vsel %vm42, %v41, 0.0
    %47 = vadd.xlane.f32.xlu0 %v46
    %v48 = vpop.xlane.xlu0 %47
    %v49 = vstv %s33
    %v50 = vadd.f32 %v45, %v49
    %v51 = vadd.f32 %v48, %v49
    %v54 = vlaneseq
    %v55 = vand.u32 %v54, 127
    %v56 = vlaneseq
    %v57 = vshrl.u32 %v56, 7
    %v58 = vsub.s32 %v55, %v57
    %v59 = vrot.slane %v50, %v58
    %v60 = vlaneseq
    %v61 = vshrl.u32 %v60, 7
    %v62 = vsub.s32 %v55, %v61
    %v63 = vrot.slane %v51, %v62
    %vm64 = vcmask 1041409
    %v65 = vsel %vm64, %v63, %v59
    %vm67 = vcmask 58368
    %v68 = vsel %vm67, %v65, -inf
    %69 = vmax.xlane.f32.xlu0 %v68
    %v70 = vpop.xlane.xlu0 %69
    %v72 = vlaneseq
    %v73 = vshrl.u32 %v72, 7
    %v74 = vsub.s32 0, %v73
    %v75 = vrot.slane %v70, %v74
    %v76 = vlaneseq
    %v77 = vshrl.u32 %v76, 7
    %v78 = vsub.s32 1, %v77
    %v79 = vrot.slane %v70, %v78
    %v82 = vsub.f32 %v50, %v75
    %v83 = vsub.f32 %v51, %v79
    %v84 = vmul.f32 %v82, 1.442695
    %v85 = vpow.pop %v84
    %v86 = vmul.f32 %v83, 1.442695
    %v87 = vpow.pop %v86
    %90 = vset.pattern.permute.xlu0 0
    %91 = vperm.xlu0 %90, %v85
    %v92 = vpop.permute.xlu0 %91
    %93 = vset.pattern.permute.xlu0 0
    %94 = vperm.xlu0 %93, %v87
    %v95 = vpop.permute.xlu0 %94
    %v96 = vlaneseq
    %v97 = vshrl.u32 %v96, 7
    %v98 = vsub.s32 %v55, %v97
    %v99 = vrot.slane %v92, %v98
    %v100 = vlaneseq
    %v101 = vshrl.u32 %v100, 7
    %v102 = vsub.s32 %v55, %v101
    %v103 = vrot.slane %v95, %v102
    %v104 = vsel %vm64, %v103, %v99
    %v106 = vsel %vm67, %v104, 0.0
    %107 = vadd.xlane.f32.xlu0 %v106
    %v108 = vpop.xlane.xlu0 %107
    %v109 = vrcp.pop %v108
    %v110 = vmul.f32 %v108, %v109
    %v111 = vsub.f32 2.0, %v110
    %v112 = vmul.f32 %v109, %v111
    %v114 = vlaneseq
    %v115 = vshrl.u32 %v114, 7
    %v116 = vsub.s32 0, %v115
    %v117 = vrot.slane %v112, %v116
    %v118 = vlaneseq
    %v119 = vshrl.u32 %v118, 7
    %v120 = vsub.s32 1, %v119
    %v121 = vrot.slane %v112, %v120
    %v124 = vmul.f32 %v85, %v117
    %v125 = vmul.f32 %v87, %v121
    %127 = vset.pattern.permute.xlu0 0
    %128 = vperm.xlu0 %127, %v124
    %v129 = vpop.permute.xlu0 %128
    %132 = vset.pattern.permute.xlu0 0
    %133 = vperm.xlu0 %132, %v125
    %v134 = vpop.permute.xlu0 %133
    %v136 = vmul.f32 %v129, %v30
    %v137 = vmul.f32 %v134, %v31
    %v138 = vsel %vm42, %v136, 0.0
    %v139 = vrot.slane %v138, 4
    %v140 = vadd.f32 %v138, %v139
    %v141 = vrot.slane %v140, 2
    %v142 = vadd.f32 %v140, %v141
    %v143 = vrot.slane %v142, 1
    %v144 = vadd.f32 %v142, %v143
    %v145 = vsel %vm42, %v137, 0.0
    %v146 = vrot.slane %v145, 4
    %v147 = vadd.f32 %v145, %v146
    %v148 = vrot.slane %v147, 2
    %v149 = vadd.f32 %v147, %v148
    %v150 = vrot.slane %v149, 1
    %v151 = vadd.f32 %v149, %v150
    %v154 = vsel %vm64, %v151, %v144
    %vm156 = vcmask 254976
    %157 = vst.msk [vmem:[#allocation6] sm:$0x3] %vm156, %v154
    // Predicated region
    $region18: #{tpu_custom_call.1} parent=1 // pred_check
      _
    $region19: #{tpu_custom_call.1} parent=1 // pred_check_branch
      %159 = sbr.rel (0) target = $region21
    $region20: #{tpu_custom_call.1} parent=1 // pred_region
      %s161 = ssub.s32 32, 32
      %162 = vsyncadd [#allocation5], %s161
      %s164 = sshll.u32 [#allocation6], 4
      %s165 = int_to_ptr.vmem [resolvable:$true] %s164
      %167 = dma.vmem_to_hbm [thread:$0]  %s165, 32, %s3, [#allocation5]
    $region21: #{tpu_custom_call.1} parent=1 // pred_fallthru
      _
    // Predicated region
    $region22: #{tpu_custom_call.1} parent=1 // pred_check
      _
    $region23: #{tpu_custom_call.1} parent=1 // pred_check_branch
      %169 = sbr.rel (0) target = $region25
    $region24: #{tpu_custom_call.1} parent=1 // pred_region
      %170 = dma.done [#allocation5], 32
    $region25: #{tpu_custom_call.1} parent=1 // pred_fallthru
      _
    %171 = vsyncpa [#allocation4], 1
    %172 = vsyncpa [#allocation5], 1

</llo_original>
